<compile_context>
chip_gen: v7x
topology: tpu7x:2x2x1
jax: 0.10.0
libtpu: 0.0.40
codegen_flags: <defaults>
</compile_context>

<pallas_src>
import functools

import jax
import jax.numpy as jnp
from jax.experimental import pallas as pl
from jax.experimental.pallas import tpu as pltpu

LANE = 128
NEG_INF = -1e30  # bias for padded logit lanes -> exp underflows to exactly 0


def _round_up(x: int, m: int) -> int:
    return (x + m - 1) // m * m


# ---------------------------------------------------------------------------
# Kernel: one batch tile per grid step.  Weights/biases are VMEM-resident
# (constant index_map); only x and the [tm, A] probabilities move per step.
# ---------------------------------------------------------------------------
def actor_net_kernel(x_ref, w1_ref, b1_ref, w2_ref, b2_ref, o_ref):
    A = o_ref.shape[-1]  # real (unpadded) action count, static at trace time
    # Hidden layer: x @ W1 + b1, ReLU   (MXU matmul, f32 accumulate; VPU relu/add)
    h = jnp.dot(x_ref[...], w1_ref[...], preferred_element_type=jnp.float32)
    h = jnp.maximum(h + b1_ref[...], 0.0)            # [tm, Hp] + [1, Hp] broadcast
    # Output layer: h @ W2 + b2  (padded action lanes carry a -1e30 bias)
    logits = jnp.dot(h, w2_ref[...], preferred_element_type=jnp.float32) + b2_ref[...]
    # Softmax over the lane axis (padded lanes contribute exp(-1e30 - m) == 0).
    m = jnp.max(logits, axis=-1, keepdims=True)
    e = jnp.exp(logits - m)
    denom = jnp.sum(e, axis=-1, keepdims=True)
    probs = e / denom
    # Store ONLY the real action lanes -> no 128-lane HBM write amplification.
    o_ref[...] = probs[:, :A].astype(o_ref.dtype)


# ---------------------------------------------------------------------------
# One-time parameter preparation (OUT of the per-call hot path).
# ---------------------------------------------------------------------------
def pad_actor_params(w1, b1, w2, b2):
    """Lane-pad params once.  w1:[K,H], b1:[H], w2:[H,A], b2:[A] (x @ W convention)."""
    K, H = w1.shape
    A = int(w2.shape[1])
    Hp = _round_up(H, LANE)
    Ap = _round_up(A, LANE)
    w1p = jnp.zeros((K, Hp), jnp.float32).at[:, :H].set(w1)
    b1p = jnp.zeros((1, Hp), jnp.float32).at[:, :H].set(b1.reshape(1, -1))
    w2p = jnp.zeros((Hp, Ap), jnp.float32).at[:H, :A].set(w2)
    b2p = jnp.full((1, Ap), NEG_INF, jnp.float32).at[:, :A].set(b2.reshape(1, -1))
    return {"w1p": w1p, "b1p": b1p, "w2p": w2p, "b2p": b2p, "action_size": A}


def _pick_batch_tile(B: int):
    """Tile ~half the batch (>=2 grid steps so both v7x TCs work), capped at 2048
    rows so VMEM stays far below v5e's 16 MiB scoped limit."""
    Bp8 = _round_up(max(B, 1), 8)
    half = _round_up((Bp8 + 1) // 2, 8)
    tm = max(8, min(2048, half))
    Bp = _round_up(Bp8, tm)
    return tm, Bp


@functools.partial(jax.jit, static_argnames=("action_size", "tm", "batch_pad"))
def _actor_forward_padded(x, w1p, b1p, w2p, b2p, *, action_size, tm, batch_pad):
    B, K = x.shape
    Hp = w1p.shape[1]
    Ap = w2p.shape[1]
    Bp = batch_pad
    xp = x if Bp == B else jnp.zeros((Bp, K), x.dtype).at[:B].set(x)

    out = pl.pallas_call(
        actor_net_kernel,
        out_shape=jax.ShapeDtypeStruct((Bp, action_size), jnp.float32),
        grid_spec=pltpu.PrefetchScalarGridSpec(
            num_scalar_prefetch=0,
            grid=(Bp // tm,),
            in_specs=[
                pl.BlockSpec((tm, K), lambda i: (i, 0)),    # x: streamed per batch tile
                pl.BlockSpec((K, Hp), lambda i: (0, 0)),    # weights/biases: VMEM-resident
                pl.BlockSpec((1, Hp), lambda i: (0, 0)),
                pl.BlockSpec((Hp, Ap), lambda i: (0, 0)),
                pl.BlockSpec((1, Ap), lambda i: (0, 0)),
            ],
            # Block last dim == full array dim (A), so the (8,128) rule is satisfied;
            # only the real action lanes ever hit HBM.
            out_specs=pl.BlockSpec((tm, action_size), lambda i: (i, 0)),
        ),
        compiler_params=pltpu.CompilerParams(
            dimension_semantics=("parallel",),  # shard batch tiles across TCs on v7x
        ),
    )(xp, w1p, b1p, w2p, b2p)

    # Only un-pad the batch when we actually padded it (no-op on aligned batches).
    return out if Bp == B else out[:B]


def actor_network_forward(x, params):
    """Fused actor-MLP forward -> [B, action_size] softmax probabilities."""
    tm, Bp = _pick_batch_tile(x.shape[0])
    return _actor_forward_padded(
        x, params["w1p"], params["b1p"], params["w2p"], params["b2p"],
        action_size=params["action_size"], tm=tm, batch_pad=Bp)


# ---------------------------------------------------------------------------
# Init + reference
# ---------------------------------------------------------------------------
def init_linear_params(key, in_features, out_features):
    """Deterministic init mirroring torch.nn.Linear's U(-1/sqrt(fan_in), +1/sqrt(fan_in)).
    Weight is returned transposed to [in, out] for the x @ W convention."""
    kw, kb = jax.random.split(key)
    bound = 1.0 / jnp.sqrt(jnp.float32(in_features))
    w = jax.random.uniform(kw, (in_features, out_features), jnp.float32, -bound, bound)
    b = jax.random.uniform(kb, (out_features,), jnp.float32, -bound, bound)
    return w, b


def _reference(x, w1, b1, w2, b2):
    h = jnp.maximum(x @ w1 + b1, 0.0)
    return jax.nn.softmax(h @ w2 + b2, axis=-1)


if __name__ == "__main__":
    input_size, hidden_size, action_size = 32, 64, 4

    key = jax.random.PRNGKey(0)
    kx1, kx2, k1, k2 = jax.random.split(key, 4)
    w1, b1 = init_linear_params(k1, input_size, hidden_size)
    w2, b2 = init_linear_params(k2, hidden_size, action_size)

    # One-time padding of the parameters (outside the per-call hot path).
    params = pad_actor_params(w1, b1, w2, b2)

    # Batched call (exercises the multi-step parallel grid: B=512 -> 2 tiles of 256).
    xb = jax.random.normal(kx1, (512, input_size), jnp.float32)
    out_b = jax.block_until_ready(actor_network_forward(xb, params))
    ref_b = _reference(xb, w1, b1, w2, b2)
    assert out_b.shape == (512, action_size)
    assert jnp.allclose(out_b, ref_b, atol=1e-5, rtol=1e-5)
    assert jnp.allclose(out_b.sum(-1), 1.0, atol=1e-5)

    # Small / ragged batch (exercises the batch-padding path).
    xs = jax.random.normal(kx2, (13, input_size), jnp.float32)
    out_s = jax.block_until_ready(actor_network_forward(xs, params))
    ref_s = _reference(xs, w1, b1, w2, b2)
    assert out_s.shape == (13, action_size)
    assert jnp.allclose(out_s, ref_s, atol=1e-5, rtol=1e-5)

    # TODO(synk): select_action's torch.multinomial is host-side sampling, not part of
    # the forward pass; use jax.random.categorical on these probabilities downstream.
    print("KERNEL_OK")
</pallas_src>

<mosaic_0001>
module attributes {stable_mosaic.version = 11 : i64} {
  func.func @actor_net_kernel(%arg0: i32, %arg1: memref<256x32xf32, #tpu.memory_space<vmem>>, %arg2: memref<32x128xf32, #tpu.memory_space<vmem>>, %arg3: memref<1x128xf32, #tpu.memory_space<vmem>>, %arg4: memref<128x128xf32, #tpu.memory_space<vmem>>, %arg5: memref<1x128xf32, #tpu.memory_space<vmem>>, %arg6: memref<256x4xf32, #tpu.memory_space<vmem>>) attributes {dimension_semantics = [#tpu.dimension_semantics<parallel>], iteration_bounds = array<i64: 2>, scalar_prefetch = 0 : i64, scratch_operands = 0 : i64, tpu.core_type = #tpu.core_type<tc>, window_params = [{transform_indices = @transform_0, window_bounds = array<i64: 256, 32>}, {pipeline_mode = #tpu.pipeline_mode<synchronous>, transform_indices = @transform_1, window_bounds = array<i64: 32, 128>}, {pipeline_mode = #tpu.pipeline_mode<synchronous>, transform_indices = @transform_2, window_bounds = array<i64: 1, 128>}, {pipeline_mode = #tpu.pipeline_mode<synchronous>, transform_indices = @transform_3, window_bounds = array<i64: 128, 128>}, {pipeline_mode = #tpu.pipeline_mode<synchronous>, transform_indices = @transform_4, window_bounds = array<i64: 1, 128>}, {transform_indices = @transform_5, window_bounds = array<i64: 256, 4>}]} {
    %c0 = arith.constant 0 : index
    %c0_0 = arith.constant 0 : index
    %0 = vector.load %arg1[%c0, %c0_0] : memref<256x32xf32, #tpu.memory_space<vmem>>, vector<256x32xf32>
    %c0_1 = arith.constant 0 : index
    %c0_2 = arith.constant 0 : index
    %1 = vector.load %arg2[%c0_1, %c0_2] : memref<32x128xf32, #tpu.memory_space<vmem>>, vector<32x128xf32>
    %cst = arith.constant dense<0.000000e+00> : vector<256x128xf32>
    %2 = tpu.matmul %0, %1, %cst {dimension_numbers = #tpu.dot_dimension_numbers<[1], [0], [0], [1], [0, 0, 1, 1], [], []>} : vector<256x32xf32>, vector<32x128xf32>, vector<256x128xf32> -> vector<256x128xf32>
    %c0_3 = arith.constant 0 : index
    %c0_4 = arith.constant 0 : index
    %3 = vector.load %arg3[%c0_3, %c0_4] : memref<1x128xf32, #tpu.memory_space<vmem>>, vector<1x128xf32>
    %4 = vector.broadcast %3 : vector<1x128xf32> to vector<256x128xf32>
    %5 = arith.addf %2, %4 : vector<256x128xf32>
    %cst_5 = arith.constant 0.000000e+00 : f32
    %6 = vector.broadcast %cst_5 : f32 to vector<256x128xf32>
    %7 = arith.maximumf %5, %6 : vector<256x128xf32>
    %c0_6 = arith.constant 0 : index
    %c0_7 = arith.constant 0 : index
    %8 = vector.load %arg4[%c0_6, %c0_7] : memref<128x128xf32, #tpu.memory_space<vmem>>, vector<128x128xf32>
    %cst_8 = arith.constant dense<0.000000e+00> : vector<256x128xf32>
    %9 = tpu.matmul %7, %8, %cst_8 {dimension_numbers = #tpu.dot_dimension_numbers<[1], [0], [0], [1], [0, 0, 1, 1], [], []>} : vector<256x128xf32>, vector<128x128xf32>, vector<256x128xf32> -> vector<256x128xf32>
    %c0_9 = arith.constant 0 : index
    %c0_10 = arith.constant 0 : index
    %10 = vector.load %arg5[%c0_9, %c0_10] : memref<1x128xf32, #tpu.memory_space<vmem>>, vector<1x128xf32>
    %11 = vector.broadcast %10 : vector<1x128xf32> to vector<256x128xf32>
    %12 = arith.addf %9, %11 : vector<256x128xf32>
    %cst_11 = arith.constant dense<0xFF800000> : vector<256xf32>
    %13 = vector.multi_reduction <maximumf>, %12, %cst_11 [1] : vector<256x128xf32> to vector<256xf32>
    %14 = vector.shape_cast %13 : vector<256xf32> to vector<256x1xf32>
    %15 = vector.broadcast %14 : vector<256x1xf32> to vector<256x128xf32>
    %16 = arith.subf %12, %15 : vector<256x128xf32>
    %17 = math.exp %16 : vector<256x128xf32>
    %cst_12 = arith.constant dense<0.000000e+00> : vector<256xf32>
    %18 = vector.multi_reduction <add>, %17, %cst_12 [1] : vector<256x128xf32> to vector<256xf32>
    %19 = vector.shape_cast %18 : vector<256xf32> to vector<256x1xf32>
    %20 = vector.broadcast %19 : vector<256x1xf32> to vector<256x128xf32>
    %21 = arith.divf %17, %20 : vector<256x128xf32>
    %22 = vector.extract_strided_slice %21 {offsets = [0, 0], sizes = [256, 4], strides = [1, 1]} : vector<256x128xf32> to vector<256x4xf32>
    %c0_13 = arith.constant 0 : index
    %c0_14 = arith.constant 0 : index
    %23 = vector.load %arg6[%c0_13, %c0_14] : memref<256x4xf32, #tpu.memory_space<vmem>>, vector<256x4xf32>
    tpu.vector_store %arg6[%c0_13, %c0_14], %22 {strides = array<i32>} : memref<256x4xf32, #tpu.memory_space<vmem>>, vector<256x4xf32>,
    return
  }
  func.func @transform_0(%arg0: i32) -> (i32, i32) {
    %c0_i32 = arith.constant 0 : i32
    %c0_i32_0 = arith.constant 0 : i32
    return %arg0, %c0_i32 : i32, i32
  }
  func.func @transform_1(%arg0: i32) -> (i32, i32) {
    %c0_i32 = arith.constant 0 : i32
    %c0_i32_0 = arith.constant 0 : i32
    %c0_i32_1 = arith.constant 0 : i32
    return %c0_i32, %c0_i32_0 : i32, i32
  }
  func.func @transform_2(%arg0: i32) -> (i32, i32) {
    %c0_i32 = arith.constant 0 : i32
    %c0_i32_0 = arith.constant 0 : i32
    %c0_i32_1 = arith.constant 0 : i32
    return %c0_i32, %c0_i32_0 : i32, i32
  }
  func.func @transform_3(%arg0: i32) -> (i32, i32) {
    %c0_i32 = arith.constant 0 : i32
    %c0_i32_0 = arith.constant 0 : i32
    %c0_i32_1 = arith.constant 0 : i32
    return %c0_i32, %c0_i32_0 : i32, i32
  }
  func.func @transform_4(%arg0: i32) -> (i32, i32) {
    %c0_i32 = arith.constant 0 : i32
    %c0_i32_0 = arith.constant 0 : i32
    %c0_i32_1 = arith.constant 0 : i32
    return %c0_i32, %c0_i32_0 : i32, i32
  }
  func.func @transform_5(%arg0: i32) -> (i32, i32) {
    %c0_i32 = arith.constant 0 : i32
    %c0_i32_0 = arith.constant 0 : i32
    return %arg0, %c0_i32 : i32, i32
  }
}

</mosaic_0001>

<llo_original>
// kernel: _actor_forward_padded.1
$region0: #{_actor_forward_padded.1}
  #allocation0 [shape = 'u32[]', space=smem, size = 0x4, offset = 0x4, fixed_abs, tag = 'smem constant byte address 0x4 - core index']
  #allocation1 [shape = 'u32[144,128]{1,0:T(1,128)}', space=vmem, size = 0x12000, scoped, tag = 'internal scratch']
  %s0 = inlined_call_operand.vmem [shape: f32[512,32], index: 0, kind: input, shape index: {}]
  %s1 = inlined_call_operand.vmem [shape: f32[32,128], index: 1, kind: input, shape index: {}]
  %s2 = inlined_call_operand.vmem [shape: f32[1,128], index: 2, kind: input, shape index: {}]
  %s3 = inlined_call_operand.vmem [shape: f32[128,128], index: 3, kind: input, shape index: {}]
  %s4 = inlined_call_operand.vmem [shape: f32[1,128], index: 4, kind: input, shape index: {}]
  %s5 = inlined_call_operand.vmem [shape: f32[512,4], index: 5, kind: output, shape index: {}]
  %s6 = sld [smem:[#allocation0]]
  $region53: #{_actor_forward_padded.1} parent=0
    _
  %s8 = ssub.s32 1, %s6
  %s9 = scalar_select 0, %s8, %s6
  loop: start=0, step=1, limit=4
  $region2: #{_actor_forward_padded.1} parent=0 // loop_pre_header
    _
  $region3: #{_actor_forward_padded.1} parent=0 // loop_header
    %s11 = sphi 0, %s15
    %p12 = scmp.ge.s32.totalorder %s11, 4
    %s21 = sphi 0, %s23
    %s24 = sphi 0, %s21
    %s25 = sphi 0, %s24
    %s41 = sphi 0, %s25
    %s45 = sphi 0, %s45
    %s47 = sphi 0, %s45
    %s48 = sphi 0, %s47
    %s62 = sphi 0, %s48
    %s66 = sphi 0, %s66
    %s68 = sphi 0, %s66
    %s69 = sphi 0, %s68
    %s83 = sphi 0, %s69
    %s87 = sphi 0, %s87
    %s89 = sphi 0, %s87
    %s90 = sphi 0, %s89
    %s104 = sphi 0, %s90
    %s108 = sphi 0, %s108
    %s110 = sphi 0, %s108
    %s111 = sphi 0, %s110
    %s125 = sphi 0, %s111
    %s131 = sphi 0, %s133
    %s134 = sphi 0, %s131
    %s135 = sphi 0, %s134
    %s151 = sphi 0, %s135
  $region4: #{_actor_forward_padded.1} parent=0 // loop_header_branch
    %14 = sbr.rel (%p12) target = $region8
  $region5: #{_actor_forward_padded.1} parent=0 // loop_body
    %s16 = ssub.s32 %s11, 1
    %s17 = ssub.s32 %s11, 2
    %s18 = sadd.s32 %s11, 1
    %s19 = ssub.s32 %s11, %s18
    %p20 = scmp.eq.s32.totalorder %s19, 0
    %s22 = sadd.s32 %s21, 1
    %s23 = scalar_select %p20, %s21, %s22
    %p26 = pneg %p20
    %p27 = scmp.eq.s32.totalorder %s11, 1
    %p28 = por %p26, %p27
    %p29 = scmp.ne.s32.totalorder %s21, %s24
    %p30 = scmp.eq.s32.totalorder %s11, 0
    %p31 = por %p29, %p30
    %p32 = scmp.ne.s32.totalorder %s21, %s24
    %p33 = scmp.eq.s32.totalorder %s16, 1
    %p34 = por %p32, %p33
    %p35 = scmp.ne.s32.totalorder %s24, %s25
    %p36 = scmp.eq.s32.totalorder %s16, 0
    %p37 = por %p35, %p36
    %p38 = scmp.ne.s32.totalorder %s24, %s25
    %p39 = scmp.eq.s32.totalorder %s17, 1
    %p40 = por %p38, %p39
    %p42 = scmp.ne.s32.totalorder %s25, %s41
    %p43 = scmp.eq.s32.totalorder %s17, 0
    %p44 = por %p42, %p43
    %s46 = sadd.s32 %s45, 1
    %p49 = scmp.eq.s32.totalorder %s11, 1
    %p50 = scmp.ne.s32.totalorder %s45, %s47
    %p51 = scmp.eq.s32.totalorder %s11, 0
    %p52 = por %p50, %p51
    %p53 = scmp.ne.s32.totalorder %s45, %s47
    %p54 = scmp.eq.s32.totalorder %s16, 1
    %p55 = por %p53, %p54
    %p56 = scmp.ne.s32.totalorder %s47, %s48
    %p57 = scmp.eq.s32.totalorder %s16, 0
    %p58 = por %p56, %p57
    %p59 = scmp.ne.s32.totalorder %s47, %s48
    %p60 = scmp.eq.s32.totalorder %s17, 1
    %p61 = por %p59, %p60
    %p63 = scmp.ne.s32.totalorder %s48, %s62
    %p64 = scmp.eq.s32.totalorder %s17, 0
    %p65 = por %p63, %p64
    %s67 = sadd.s32 %s66, 1
    %p70 = scmp.eq.s32.totalorder %s11, 1
    %p71 = scmp.ne.s32.totalorder %s66, %s68
    %p72 = scmp.eq.s32.totalorder %s11, 0
    %p73 = por %p71, %p72
    %p74 = scmp.ne.s32.totalorder %s66, %s68
    %p75 = scmp.eq.s32.totalorder %s16, 1
    %p76 = por %p74, %p75
    %p77 = scmp.ne.s32.totalorder %s68, %s69
    %p78 = scmp.eq.s32.totalorder %s16, 0
    %p79 = por %p77, %p78
    %p80 = scmp.ne.s32.totalorder %s68, %s69
    %p81 = scmp.eq.s32.totalorder %s17, 1
    %p82 = por %p80, %p81
    %p84 = scmp.ne.s32.totalorder %s69, %s83
    %p85 = scmp.eq.s32.totalorder %s17, 0
    %p86 = por %p84, %p85
    %s88 = sadd.s32 %s87, 1
    %p91 = scmp.eq.s32.totalorder %s11, 1
    %p92 = scmp.ne.s32.totalorder %s87, %s89
    %p93 = scmp.eq.s32.totalorder %s11, 0
    %p94 = por %p92, %p93
    %p95 = scmp.ne.s32.totalorder %s87, %s89
    %p96 = scmp.eq.s32.totalorder %s16, 1
    %p97 = por %p95, %p96
    %p98 = scmp.ne.s32.totalorder %s89, %s90
    %p99 = scmp.eq.s32.totalorder %s16, 0
    %p100 = por %p98, %p99
    %p101 = scmp.ne.s32.totalorder %s89, %s90
    %p102 = scmp.eq.s32.totalorder %s17, 1
    %p103 = por %p101, %p102
    %p105 = scmp.ne.s32.totalorder %s90, %s104
    %p106 = scmp.eq.s32.totalorder %s17, 0
    %p107 = por %p105, %p106
    %s109 = sadd.s32 %s108, 1
    %p112 = scmp.eq.s32.totalorder %s11, 1
    %p113 = scmp.ne.s32.totalorder %s108, %s110
    %p114 = scmp.eq.s32.totalorder %s11, 0
    %p115 = por %p113, %p114
    %p116 = scmp.ne.s32.totalorder %s108, %s110
    %p117 = scmp.eq.s32.totalorder %s16, 1
    %p118 = por %p116, %p117
    %p119 = scmp.ne.s32.totalorder %s110, %s111
    %p120 = scmp.eq.s32.totalorder %s16, 0
    %p121 = por %p119, %p120
    %p122 = scmp.ne.s32.totalorder %s110, %s111
    %p123 = scmp.eq.s32.totalorder %s17, 1
    %p124 = por %p122, %p123
    %p126 = scmp.ne.s32.totalorder %s111, %s125
    %p127 = scmp.eq.s32.totalorder %s17, 0
    %p128 = por %p126, %p127
    %s129 = ssub.s32 %s11, %s18
    %p130 = scmp.eq.s32.totalorder %s129, 0
    %s132 = sadd.s32 %s131, 1
    %s133 = scalar_select %p130, %s131, %s132
    %p136 = pneg %p130
    %p137 = scmp.eq.s32.totalorder %s11, 1
    %p138 = por %p136, %p137
    %p139 = scmp.ne.s32.totalorder %s131, %s134
    %p140 = scmp.eq.s32.totalorder %s11, 0
    %p141 = por %p139, %p140
    %p142 = scmp.ne.s32.totalorder %s131, %s134
    %p143 = scmp.eq.s32.totalorder %s16, 1
    %p144 = por %p142, %p143
    %p145 = scmp.ne.s32.totalorder %s134, %s135
    %p146 = scmp.eq.s32.totalorder %s16, 0
    %p147 = por %p145, %p146
    %p148 = scmp.ne.s32.totalorder %s134, %s135
    %p149 = scmp.eq.s32.totalorder %s17, 1
    %p150 = por %p148, %p149
    %p152 = scmp.ne.s32.totalorder %s135, %s151
    %p153 = scmp.eq.s32.totalorder %s17, 0
    %p154 = por %p152, %p153
    %p155 = scmp.le.s32.totalorder 1, %s11
    %p156 = scmp.lt.s32.totalorder %s11, 3
    %p157 = pnand %p155, %p156
    %p158 = pneg %p157
    // Predicated region
    $region9: #{_actor_forward_padded.1} parent=5 // pred_check
      _
    $region10: #{_actor_forward_padded.1} parent=5 // pred_check_branch
      %160 = sbr.rel (%p157) target = $region12
    $region11: #{_actor_forward_padded.1} parent=5 // pred_region
      %s161 = ssub.s32 %s11, 1
      // Predicated region
      $region13: #{_actor_forward_padded.1} parent=11 // pred_check
        %p162 = pneg %p58
      $region14: #{_actor_forward_padded.1} parent=11 // pred_check_branch
        %164 = sbr.rel (%p162) target = $region16
      $region15: #{_actor_forward_padded.1} parent=11 // pred_region
        _
      $region16: #{_actor_forward_padded.1} parent=11 // pred_fallthru
        _
      // Predicated region
      $region17: #{_actor_forward_padded.1} parent=11 // pred_check
        %p165 = pneg %p79
      $region18: #{_actor_forward_padded.1} parent=11 // pred_check_branch
        %167 = sbr.rel (%p165) target = $region20
      $region19: #{_actor_forward_padded.1} parent=11 // pred_region
        _
      $region20: #{_actor_forward_padded.1} parent=11 // pred_fallthru
        _
      // Predicated region
      $region21: #{_actor_forward_padded.1} parent=11 // pred_check
        %p168 = pneg %p100
      $region22: #{_actor_forward_padded.1} parent=11 // pred_check_branch
        %170 = sbr.rel (%p168) target = $region24
      $region23: #{_actor_forward_padded.1} parent=11 // pred_region
        _
      $region24: #{_actor_forward_padded.1} parent=11 // pred_fallthru
        _
      // Predicated region
      $region25: #{_actor_forward_padded.1} parent=11 // pred_check
        %p171 = pneg %p121
      $region26: #{_actor_forward_padded.1} parent=11 // pred_check_branch
        %173 = sbr.rel (%p171) target = $region28
      $region27: #{_actor_forward_padded.1} parent=11 // pred_region
        _
      $region28: #{_actor_forward_padded.1} parent=11 // pred_fallthru
        _
    $region12: #{_actor_forward_padded.1} parent=5 // pred_fallthru
      _
    %p174 = scmp.lt.s32.totalorder %s11, 2
    // Predicated region
    $region29: #{_actor_forward_padded.1} parent=5 // pred_check
      %p175 = pneg %p174
    $region30: #{_actor_forward_padded.1} parent=5 // pred_check_branch
      %177 = sbr.rel (%p175) target = $region32
    $region31: #{_actor_forward_padded.1} parent=5 // pred_region
      // Predicated region
      $region33: #{_actor_forward_padded.1} parent=31 // pred_check
        %p178 = pneg %p31
      $region34: #{_actor_forward_padded.1} parent=31 // pred_check_branch
        %180 = sbr.rel (%p178) target = $region36
      $region35: #{_actor_forward_padded.1} parent=31 // pred_region
        %s181 = smul.u32 32, %s11
        %p182 = scmp.lt.s32.totalorder %s181, 63
        %s183 = scalar_select %p182, %s181, 63
        %s184 = smul.addr %s183, 8
        %s185 = scalar_lea.vmem %s0, %s184
        %s186 = smul.u32 32, %s11
      $region36: #{_actor_forward_padded.1} parent=31 // pred_fallthru
        _
    $region32: #{_actor_forward_padded.1} parent=5 // pred_fallthru
      _
    %p187 = scmp.le.s32.totalorder 1, %s11
    %p188 = scmp.lt.s32.totalorder %s11, 3
    %p189 = pnand %p187, %p188
    %p190 = pneg %p189
    // Predicated region
    $region37: #{_actor_forward_padded.1} parent=5 // pred_check
      _
    $region38: #{_actor_forward_padded.1} parent=5 // pred_check_branch
      %192 = sbr.rel (%p189) target = $region40
    $region39: #{_actor_forward_padded.1} parent=5 // pred_region
      %s193 = ssub.s32 %s11, 1
      %s194 = smul.u32 32, %s16
      %p195 = scmp.lt.s32.totalorder %s194, 63
      %s196 = scalar_select %p195, %s194, 63
      %s197 = smul.addr %s196, 8
      %s198 = scalar_lea.vmem %s0, %s197
      %p199 = pneg %p37
      %p200 = pneg %p34
      %p201 = pneg %p58
      %p202 = pneg %p55
      %p203 = pneg %p79
      %p204 = pneg %p76
      %p205 = pneg %p100
      %p206 = pneg %p97
      %p207 = pneg %p121
      %p208 = pneg %p118
      %p209 = pneg %p147
      %p210 = pneg %p144
      %s211 = smul.u32 32, %s16
      %p212 = scmp.lt.s32.totalorder %s211, 63
      %s213 = scalar_select %p212, %s211, 63
      %s214 = smul.addr %s213, 8
      %s215 = scalar_lea.vmem %s5, %s214
      %s216 = smul.u32 32, %s16
      %p217 = scmp.lt.s32.totalorder %s216, 63
      %s218 = scalar_select %p217, %s216, 63
      %s219 = smul.addr %s218, 8
      %s220 = scalar_lea.vmem %s0, %s219
      %s221 = smul.u32 32, %s16
      %s222 = smul.u32 32, %s16
      %p223 = scmp.lt.s32.totalorder %s222, 63
      %s224 = scalar_select %p223, %s222, 63
      %s225 = smul.addr %s224, 8
      %s226 = scalar_lea.vmem %s5, %s225
      %s227 = smul.u32 32, %s16
      %v228 = vld [vmem:[%s220] sm:$0xff]
      %v229 = vld [vmem:[%s220 + $0x8] sm:$0xff]
      %v230 = vld [vmem:[%s220 + $0x10] sm:$0xff]
      %v231 = vld [vmem:[%s220 + $0x18] sm:$0xff]
      %v232 = vld [vmem:[%s220 + $0x20] sm:$0xff]
      %v233 = vld [vmem:[%s220 + $0x28] sm:$0xff]
      %v234 = vld [vmem:[%s220 + $0x30] sm:$0xff]
      %v235 = vld [vmem:[%s220 + $0x38] sm:$0xff]
      %v236 = vld [vmem:[%s220 + $0x40] sm:$0xff]
      %v237 = vld [vmem:[%s220 + $0x48] sm:$0xff]
      %v238 = vld [vmem:[%s220 + $0x50] sm:$0xff]
      %v239 = vld [vmem:[%s220 + $0x58] sm:$0xff]
      %v240 = vld [vmem:[%s220 + $0x60] sm:$0xff]
      %v241 = vld [vmem:[%s220 + $0x68] sm:$0xff]
      %v242 = vld [vmem:[%s220 + $0x70] sm:$0xff]
      %v243 = vld [vmem:[%s220 + $0x78] sm:$0xff]
      %v244 = vld [vmem:[%s220 + $0x80] sm:$0xff]
      %v245 = vld [vmem:[%s220 + $0x88] sm:$0xff]
      %v246 = vld [vmem:[%s220 + $0x90] sm:$0xff]
      %v247 = vld [vmem:[%s220 + $0x98] sm:$0xff]
      %v248 = vld [vmem:[%s220 + $0xa0] sm:$0xff]
      %v249 = vld [vmem:[%s220 + $0xa8] sm:$0xff]
      %v250 = vld [vmem:[%s220 + $0xb0] sm:$0xff]
      %v251 = vld [vmem:[%s220 + $0xb8] sm:$0xff]
      %v252 = vld [vmem:[%s220 + $0xc0] sm:$0xff]
      %v253 = vld [vmem:[%s220 + $0xc8] sm:$0xff]
      %v254 = vld [vmem:[%s220 + $0xd0] sm:$0xff]
      %v255 = vld [vmem:[%s220 + $0xd8] sm:$0xff]
      %v256 = vld [vmem:[%s220 + $0xe0] sm:$0xff]
      %v257 = vld [vmem:[%s220 + $0xe8] sm:$0xff]
      %v258 = vld [vmem:[%s220 + $0xf0] sm:$0xff]
      %v259 = vld [vmem:[%s220 + $0xf8] sm:$0xff]
      %v260 = vld [vmem:[%s1] sm:$0xff]
      %v261 = vld [vmem:[%s1 + $0x8] sm:$0xff]
      %v262 = vld [vmem:[%s1 + $0x10] sm:$0xff]
      %v263 = vld [vmem:[%s1 + $0x18] sm:$0xff]
      %v264 = vld [vmem:[%s2] sm:$0x1]
      %v266 = vlaneseq
      %v267 = vshrl.u32 %v266, 7
      %v268 = vsub.s32 0, %v267
      %v269 = vrot.slane %v264, %v268
      %vm271 = vcmask 261120
      %v273 = vsel %vm271, %v228, 0
      %v276 = vsel %vm271, %v229, 0
      %v279 = vsel %vm271, %v230, 0
      %v282 = vsel %vm271, %v231, 0
      %v285 = vsel %vm271, %v232, 0
      %v288 = vsel %vm271, %v233, 0
      %v291 = vsel %vm271, %v234, 0
      %v294 = vsel %vm271, %v235, 0
      %v297 = vsel %vm271, %v236, 0
      %v300 = vsel %vm271, %v237, 0
      %v303 = vsel %vm271, %v238, 0
      %v306 = vsel %vm271, %v239, 0
      %v309 = vsel %vm271, %v240, 0
      %v312 = vsel %vm271, %v241, 0
      %v315 = vsel %vm271, %v242, 0
      %v318 = vsel %vm271, %v243, 0
      %v321 = vsel %vm271, %v244, 0
      %v324 = vsel %vm271, %v245, 0
      %v327 = vsel %vm271, %v246, 0
      %v330 = vsel %vm271, %v247, 0
      %v333 = vsel %vm271, %v248, 0
      %v336 = vsel %vm271, %v249, 0
      %v339 = vsel %vm271, %v250, 0
      %v342 = vsel %vm271, %v251, 0
      %v345 = vsel %vm271, %v252, 0
      %v348 = vsel %vm271, %v253, 0
      %v351 = vsel %vm271, %v254, 0
      %v354 = vsel %vm271, %v255, 0
      %v357 = vsel %vm271, %v256, 0
      %v360 = vsel %vm271, %v257, 0
      %v363 = vsel %vm271, %v258, 0
      %v366 = vsel %vm271, %v259, 0
      %368 = vmatprep.subr.mxu0 0.0
      %369 = vmatpush1.msra.mxu0 %v260
      %370 = vmatprep.subr.mxu0 0.0
      %371 = vmatpush1.msra.mxu0 %v261
      %372 = vmatprep.subr.mxu0 0.0
      %373 = vmatpush1.msra.mxu0 %v262
      %374 = vmatprep.subr.mxu0 0.0
      %375 = vmatpush1.msra.mxu0 %v263
      %376 = vmatprep.subr.mxu0 0.0
      %377 = vmatpush1.msra.mxu0 0.0
      %378 = vmatprep.subr.mxu0 0.0
      %379 = vmatpush1.msra.mxu0 0.0
      %380 = vmatprep.subr.mxu0 0.0
      %381 = vmatpush1.msra.mxu0 0.0
      %382 = vmatprep.subr.mxu0 0.0
      %383 = vmatpush1.msra.mxu0 0.0
      %384 = vmatprep.subr.mxu0 0.0
      %385 = vmatpush1.msra.mxu0 0.0
      %386 = vmatprep.subr.mxu0 0.0
      %387 = vmatpush1.msra.mxu0 0.0
      %388 = vmatprep.subr.mxu0 0.0
      %389 = vmatpush1.msra.mxu0 0.0
      %390 = vmatprep.subr.mxu0 0.0
      %391 = vmatpush1.msra.mxu0 0.0
      %392 = vmatprep.subr.mxu0 0.0
      %393 = vmatpush1.msra.mxu0 0.0
      %394 = vmatprep.subr.mxu0 0.0
      %395 = vmatpush1.msra.mxu0 0.0
      %396 = vmatprep.subr.mxu0 0.0
      %397 = vmatpush1.msra.mxu0 0.0
      %398 = vmatprep.subr.mxu0 0.0
      %399 = vmatpush1.msra.mxu0 0.0
      %400 = vmatprep.subr.mxu0 0.0
      %401 = vmatpush1.msra.mxu0 0.0
      %402 = vmatprep.subr.mxu0 0.0
      %403 = vmatpush1.msra.mxu0 0.0
      %404 = vmatprep.subr.mxu0 0.0
      %405 = vmatpush1.msra.mxu0 0.0
      %406 = vmatprep.subr.mxu0 0.0
      %407 = vmatpush1.msra.mxu0 0.0
      %408 = vmatprep.subr.mxu0 0.0
      %409 = vmatpush1.msra.mxu0 0.0
      %410 = vmatprep.subr.mxu0 0.0
      %411 = vmatpush1.msra.mxu0 0.0
      %412 = vmatprep.subr.mxu0 0.0
      %413 = vmatpush1.msra.mxu0 0.0
      %414 = vmatprep.subr.mxu0 0.0
      %415 = vmatpush1.msra.mxu0 0.0
      %416 = vmatprep.subr.mxu0 0.0
      %417 = vmatpush1.msra.mxu0 0.0
      %418 = vmatprep.subr.mxu0 0.0
      %419 = vmatpush1.msra.mxu0 0.0
      %420 = vmatprep.subr.mxu0 0.0
      %421 = vmatpush1.msra.mxu0 0.0
      %422 = vmatprep.subr.mxu0 0.0
      %423 = vmatpush1.msra.mxu0 0.0
      %424 = vmatprep.subr.mxu0 0.0
      %425 = vmatpush1.msra.mxu0 0.0
      %426 = vmatprep.subr.mxu0 0.0
      %427 = vmatpush1.msra.mxu0 0.0
      %428 = vmatprep.subr.mxu0 0.0
      %429 = vmatpush1.msra.mxu0 0.0
      %430 = vmatprep.subr.mxu0 0.0
      %431 = vmatpush1.msra.mxu0 0.0
      %432 = vmatprep.mubr.f32.mxu0 0.0
      %433 = vmatmul.mubr.f32.gmra.mrb[0].mxu0 %v273
      %v434 = vpop.f32.mrb[0].mxu0
      %v435 = vadd.f32 %v269, %v434
      %v436 = vpop.f32.mrb[0].mxu0
      %437 = vmatprep.mubr.f32.mxu0 0.0
      %438 = vmatmul.mubr.f32.gmra.mrb[0].mxu0 %v276
      %v439 = vpop.f32.mrb[0].mxu0
      %v440 = vadd.f32 %v269, %v439
      %v441 = vpop.f32.mrb[0].mxu0
      %442 = vmatprep.mubr.f32.mxu0 0.0
      %443 = vmatmul.mubr.f32.gmra.mrb[0].mxu0 %v279
      %v444 = vpop.f32.mrb[0].mxu0
      %v445 = vadd.f32 %v269, %v444
      %v446 = vpop.f32.mrb[0].mxu0
      %447 = vmatprep.mubr.f32.mxu0 0.0
      %448 = vmatmul.mubr.f32.gmra.mrb[0].mxu0 %v282
      %v449 = vpop.f32.mrb[0].mxu0
      %v450 = vadd.f32 %v269, %v449
      %v451 = vpop.f32.mrb[0].mxu0
      %452 = vmatprep.mubr.f32.mxu0 0.0
      %453 = vmatmul.mubr.f32.gmra.mrb[0].mxu0 %v285
      %v454 = vpop.f32.mrb[0].mxu0
      %v455 = vadd.f32 %v269, %v454
      %v456 = vpop.f32.mrb[0].mxu0
      %457 = vmatprep.mubr.f32.mxu0 0.0
      %458 = vmatmul.mubr.f32.gmra.mrb[0].mxu0 %v288
      %v459 = vpop.f32.mrb[0].mxu0
      %v460 = vadd.f32 %v269, %v459
      %v461 = vpop.f32.mrb[0].mxu0
      %462 = vmatprep.mubr.f32.mxu0 0.0
      %463 = vmatmul.mubr.f32.gmra.mrb[0].mxu0 %v291
      %v464 = vpop.f32.mrb[0].mxu0
      %v465 = vadd.f32 %v269, %v464
      %v466 = vpop.f32.mrb[0].mxu0
      %467 = vmatprep.mubr.f32.mxu0 0.0
      %468 = vmatmul.mubr.f32.gmra.mrb[0].mxu0 %v294
      %v469 = vpop.f32.mrb[0].mxu0
      %v470 = vadd.f32 %v269, %v469
      %v471 = vpop.f32.mrb[0].mxu0
      %472 = vmatprep.mubr.f32.mxu0 0.0
      %473 = vmatmul.mubr.f32.gmra.mrb[0].mxu0 %v297
      %v474 = vpop.f32.mrb[0].mxu0
      %v475 = vadd.f32 %v269, %v474
      %v476 = vpop.f32.mrb[0].mxu0
      %477 = vmatprep.mubr.f32.mxu0 0.0
      %478 = vmatmul.mubr.f32.gmra.mrb[0].mxu0 %v300
      %v479 = vpop.f32.mrb[0].mxu0
      %v480 = vadd.f32 %v269, %v479
      %v481 = vpop.f32.mrb[0].mxu0
      %482 = vmatprep.mubr.f32.mxu0 0.0
      %483 = vmatmul.mubr.f32.gmra.mrb[0].mxu0 %v303
      %v484 = vpop.f32.mrb[0].mxu0
      %v485 = vadd.f32 %v269, %v484
      %v486 = vpop.f32.mrb[0].mxu0
      %487 = vmatprep.mubr.f32.mxu0 0.0
      %488 = vmatmul.mubr.f32.gmra.mrb[0].mxu0 %v306
      %v489 = vpop.f32.mrb[0].mxu0
      %v490 = vadd.f32 %v269, %v489
      %v491 = vpop.f32.mrb[0].mxu0
      %492 = vmatprep.mubr.f32.mxu0 0.0
      %493 = vmatmul.mubr.f32.gmra.mrb[0].mxu0 %v309
      %v494 = vpop.f32.mrb[0].mxu0
      %v495 = vadd.f32 %v269, %v494
      %v496 = vpop.f32.mrb[0].mxu0
      %497 = vmatprep.mubr.f32.mxu0 0.0
      %498 = vmatmul.mubr.f32.gmra.mrb[0].mxu0 %v312
      %v499 = vpop.f32.mrb[0].mxu0
      %v500 = vadd.f32 %v269, %v499
      %v501 = vpop.f32.mrb[0].mxu0
      %502 = vmatprep.mubr.f32.mxu0 0.0
      %503 = vmatmul.mubr.f32.gmra.mrb[0].mxu0 %v315
      %v504 = vpop.f32.mrb[0].mxu0
      %v505 = vadd.f32 %v269, %v504
      %v506 = vpop.f32.mrb[0].mxu0
      %507 = vmatprep.mubr.f32.mxu0 0.0
      %508 = vmatmul.mubr.f32.gmra.mrb[0].mxu0 %v318
      %v509 = vpop.f32.mrb[0].mxu0
      %v510 = vadd.f32 %v269, %v509
      %v511 = vpop.f32.mrb[0].mxu0
      %512 = vmatprep.mubr.f32.mxu0 0.0
      %513 = vmatmul.mubr.f32.gmra.mrb[0].mxu0 %v321
      %v514 = vpop.f32.mrb[0].mxu0
      %v515 = vadd.f32 %v269, %v514
      %v516 = vpop.f32.mrb[0].mxu0
      %517 = vmatprep.mubr.f32.mxu0 0.0
      %518 = vmatmul.mubr.f32.gmra.mrb[0].mxu0 %v324
      %v519 = vpop.f32.mrb[0].mxu0
      %v520 = vadd.f32 %v269, %v519
      %v521 = vpop.f32.mrb[0].mxu0
      %522 = vmatprep.mubr.f32.mxu0 0.0
      %523 = vmatmul.mubr.f32.gmra.mrb[0].mxu0 %v327
      %v524 = vpop.f32.mrb[0].mxu0
      %v525 = vadd.f32 %v269, %v524
      %v526 = vpop.f32.mrb[0].mxu0
      %527 = vmatprep.mubr.f32.mxu0 0.0
      %528 = vmatmul.mubr.f32.gmra.mrb[0].mxu0 %v330
      %v529 = vpop.f32.mrb[0].mxu0
      %v530 = vadd.f32 %v269, %v529
      %v531 = vpop.f32.mrb[0].mxu0
      %532 = vmatprep.mubr.f32.mxu0 0.0
      %533 = vmatmul.mubr.f32.gmra.mrb[0].mxu0 %v333
      %v534 = vpop.f32.mrb[0].mxu0
      %v535 = vadd.f32 %v269, %v534
      %v536 = vpop.f32.mrb[0].mxu0
      %537 = vmatprep.mubr.f32.mxu0 0.0
      %538 = vmatmul.mubr.f32.gmra.mrb[0].mxu0 %v336
      %v539 = vpop.f32.mrb[0].mxu0
      %v540 = vadd.f32 %v269, %v539
      %v541 = vpop.f32.mrb[0].mxu0
      %542 = vmatprep.mubr.f32.mxu0 0.0
      %543 = vmatmul.mubr.f32.gmra.mrb[0].mxu0 %v339
      %v544 = vpop.f32.mrb[0].mxu0
      %v545 = vadd.f32 %v269, %v544
      %v546 = vpop.f32.mrb[0].mxu0
      %547 = vmatprep.mubr.f32.mxu0 0.0
      %548 = vmatmul.mubr.f32.gmra.mrb[0].mxu0 %v342
      %v549 = vpop.f32.mrb[0].mxu0
      %v550 = vadd.f32 %v269, %v549
      %v551 = vpop.f32.mrb[0].mxu0
      %552 = vmatprep.mubr.f32.mxu0 0.0
      %553 = vmatmul.mubr.f32.gmra.mrb[0].mxu0 %v345
      %v554 = vpop.f32.mrb[0].mxu0
      %v555 = vadd.f32 %v269, %v554
      %v556 = vpop.f32.mrb[0].mxu0
      %557 = vmatprep.mubr.f32.mxu0 0.0
      %558 = vmatmul.mubr.f32.gmra.mrb[0].mxu0 %v348
      %v559 = vpop.f32.mrb[0].mxu0
      %v560 = vadd.f32 %v269, %v559
      %v561 = vpop.f32.mrb[0].mxu0
      %562 = vmatprep.mubr.f32.mxu0 0.0
      %563 = vmatmul.mubr.f32.gmra.mrb[0].mxu0 %v351
      %v564 = vpop.f32.mrb[0].mxu0
      %v565 = vadd.f32 %v269, %v564
      %v566 = vpop.f32.mrb[0].mxu0
      %567 = vmatprep.mubr.f32.mxu0 0.0
      %568 = vmatmul.mubr.f32.gmra.mrb[0].mxu0 %v354
      %v569 = vpop.f32.mrb[0].mxu0
      %v570 = vadd.f32 %v269, %v569
      %v571 = vpop.f32.mrb[0].mxu0
      %572 = vmatprep.mubr.f32.mxu0 0.0
      %573 = vmatmul.mubr.f32.gmra.mrb[0].mxu0 %v357
      %v574 = vpop.f32.mrb[0].mxu0
      %v575 = vadd.f32 %v269, %v574
      %v576 = vpop.f32.mrb[0].mxu0
      %577 = vmatprep.mubr.f32.mxu0 0.0
      %578 = vmatmul.mubr.f32.gmra.mrb[0].mxu0 %v360
      %v579 = vpop.f32.mrb[0].mxu0
      %v580 = vadd.f32 %v269, %v579
      %v581 = vpop.f32.mrb[0].mxu0
      %582 = vmatprep.mubr.f32.mxu0 0.0
      %583 = vmatmul.mubr.f32.gmra.mrb[0].mxu0 %v363
      %v584 = vpop.f32.mrb[0].mxu0
      %v585 = vadd.f32 %v269, %v584
      %v586 = vpop.f32.mrb[0].mxu0
      %587 = vmatprep.mubr.f32.mxu0 0.0
      %588 = vmatmul.mubr.f32.gmra.mrb[0].mxu0 %v366
      %v589 = vpop.f32.mrb[0].mxu0
      %v590 = vadd.f32 %v269, %v589
      %v591 = vpop.f32.mrb[0].mxu0
      %592 = vdwg.mxu0
      %v593 = vmax.f32 %v435, 0.0
      %v594 = vmax.f32 %v440, 0.0
      %v595 = vmax.f32 %v445, 0.0
      %v596 = vmax.f32 %v450, 0.0
      %v597 = vmax.f32 %v455, 0.0
      %v598 = vmax.f32 %v460, 0.0
      %v599 = vmax.f32 %v465, 0.0
      %v600 = vmax.f32 %v470, 0.0
      %v601 = vmax.f32 %v475, 0.0
      %v602 = vmax.f32 %v480, 0.0
      %v603 = vmax.f32 %v485, 0.0
      %v604 = vmax.f32 %v490, 0.0
      %v605 = vmax.f32 %v495, 0.0
      %v606 = vmax.f32 %v500, 0.0
      %v607 = vmax.f32 %v505, 0.0
      %v608 = vmax.f32 %v510, 0.0
      %v609 = vmax.f32 %v515, 0.0
      %v610 = vmax.f32 %v520, 0.0
      %v611 = vmax.f32 %v525, 0.0
      %v612 = vmax.f32 %v530, 0.0
      %v613 = vmax.f32 %v535, 0.0
      %v614 = vmax.f32 %v540, 0.0
      %v615 = vmax.f32 %v545, 0.0
      %v616 = vmax.f32 %v550, 0.0
      %v617 = vmax.f32 %v555, 0.0
      %v618 = vmax.f32 %v560, 0.0
      %v619 = vmax.f32 %v565, 0.0
      %v620 = vmax.f32 %v570, 0.0
      %v621 = vmax.f32 %v575, 0.0
      %v622 = vmax.f32 %v580, 0.0
      %v623 = vmax.f32 %v585, 0.0
      %v624 = vmax.f32 %v590, 0.0
      %v625 = vld [vmem:[%s3] sm:$0xff]
      %v626 = vld [vmem:[%s3 + $0x8] sm:$0xff]
      %v627 = vld [vmem:[%s3 + $0x10] sm:$0xff]
      %v628 = vld [vmem:[%s3 + $0x18] sm:$0xff]
      %v629 = vld [vmem:[%s3 + $0x20] sm:$0xff]
      %v630 = vld [vmem:[%s3 + $0x28] sm:$0xff]
      %v631 = vld [vmem:[%s3 + $0x30] sm:$0xff]
      %v632 = vld [vmem:[%s3 + $0x38] sm:$0xff]
      %v633 = vld [vmem:[%s3 + $0x40] sm:$0xff]
      %v634 = vld [vmem:[%s3 + $0x48] sm:$0xff]
      %v635 = vld [vmem:[%s3 + $0x50] sm:$0xff]
      %v636 = vld [vmem:[%s3 + $0x58] sm:$0xff]
      %v637 = vld [vmem:[%s3 + $0x60] sm:$0xff]
      %v638 = vld [vmem:[%s3 + $0x68] sm:$0xff]
      %v639 = vld [vmem:[%s3 + $0x70] sm:$0xff]
      %v640 = vld [vmem:[%s3 + $0x78] sm:$0xff]
      %v641 = vld [vmem:[%s4] sm:$0x1]
      %v643 = vlaneseq
      %v644 = vshrl.u32 %v643, 7
      %v645 = vsub.s32 0, %v644
      %v646 = vrot.slane %v641, %v645
      %648 = vmatprep.subr.mxu0 0.0
      %649 = vmatpush1.msra.mxu0 %v625
      %650 = vmatprep.subr.mxu0 0.0
      %651 = vmatpush1.msra.mxu0 %v626
      %652 = vmatprep.subr.mxu0 0.0
      %653 = vmatpush1.msra.mxu0 %v627
      %654 = vmatprep.subr.mxu0 0.0
      %655 = vmatpush1.msra.mxu0 %v628
      %656 = vmatprep.subr.mxu0 0.0
      %657 = vmatpush1.msra.mxu0 %v629
      %658 = vmatprep.subr.mxu0 0.0
      %659 = vmatpush1.msra.mxu0 %v630
      %660 = vmatprep.subr.mxu0 0.0
      %661 = vmatpush1.msra.mxu0 %v631
      %662 = vmatprep.subr.mxu0 0.0
      %663 = vmatpush1.msra.mxu0 %v632
      %664 = vmatprep.subr.mxu0 0.0
      %665 = vmatpush1.msra.mxu0 %v633
      %666 = vmatprep.subr.mxu0 0.0
      %667 = vmatpush1.msra.mxu0 %v634
      %668 = vmatprep.subr.mxu0 0.0
      %669 = vmatpush1.msra.mxu0 %v635
      %670 = vmatprep.subr.mxu0 0.0
      %671 = vmatpush1.msra.mxu0 %v636
      %672 = vmatprep.subr.mxu0 0.0
      %673 = vmatpush1.msra.mxu0 %v637
      %674 = vmatprep.subr.mxu0 0.0
      %675 = vmatpush1.msra.mxu0 %v638
      %676 = vmatprep.subr.mxu0 0.0
      %677 = vmatpush1.msra.mxu0 %v639
      %678 = vmatprep.subr.mxu0 0.0
      %679 = vmatpush1.msra.mxu0 %v640
      %680 = vmatprep.subr.mxu0 0.0
      %681 = vmatpush1.msra.mxu0 0.0
      %682 = vmatprep.subr.mxu0 0.0
      %683 = vmatpush1.msra.mxu0 0.0
      %684 = vmatprep.subr.mxu0 0.0
      %685 = vmatpush1.msra.mxu0 0.0
      %686 = vmatprep.subr.mxu0 0.0
      %687 = vmatpush1.msra.mxu0 0.0
      %688 = vmatprep.subr.mxu0 0.0
      %689 = vmatpush1.msra.mxu0 0.0
      %690 = vmatprep.subr.mxu0 0.0
      %691 = vmatpush1.msra.mxu0 0.0
      %692 = vmatprep.subr.mxu0 0.0
      %693 = vmatpush1.msra.mxu0 0.0
      %694 = vmatprep.subr.mxu0 0.0
      %695 = vmatpush1.msra.mxu0 0.0
      %696 = vmatprep.subr.mxu0 0.0
      %697 = vmatpush1.msra.mxu0 0.0
      %698 = vmatprep.subr.mxu0 0.0
      %699 = vmatpush1.msra.mxu0 0.0
      %700 = vmatprep.subr.mxu0 0.0
      %701 = vmatpush1.msra.mxu0 0.0
      %702 = vmatprep.subr.mxu0 0.0
      %703 = vmatpush1.msra.mxu0 0.0
      %704 = vmatprep.subr.mxu0 0.0
      %705 = vmatpush1.msra.mxu0 0.0
      %706 = vmatprep.subr.mxu0 0.0
      %707 = vmatpush1.msra.mxu0 0.0
      %708 = vmatprep.subr.mxu0 0.0
      %709 = vmatpush1.msra.mxu0 0.0
      %710 = vmatprep.subr.mxu0 0.0
      %711 = vmatpush1.msra.mxu0 0.0
      %712 = vmatprep.mubr.f32.mxu0 0.0
      %713 = vmatmul.mubr.f32.gmra.mrb[0].mxu0 %v593
      %v714 = vpop.f32.mrb[0].mxu0
      %v715 = vadd.f32 %v646, %v714
      %v716 = vpop.f32.mrb[0].mxu0
      %717 = vmatprep.mubr.f32.mxu0 0.0
      %718 = vmatmul.mubr.f32.gmra.mrb[0].mxu0 %v594
      %v719 = vpop.f32.mrb[0].mxu0
      %v720 = vadd.f32 %v646, %v719
      %v721 = vpop.f32.mrb[0].mxu0
      %722 = vmatprep.mubr.f32.mxu0 0.0
      %723 = vmatmul.mubr.f32.gmra.mrb[0].mxu0 %v595
      %v724 = vpop.f32.mrb[0].mxu0
      %v725 = vadd.f32 %v646, %v724
      %v726 = vpop.f32.mrb[0].mxu0
      %727 = vmatprep.mubr.f32.mxu0 0.0
      %728 = vmatmul.mubr.f32.gmra.mrb[0].mxu0 %v596
      %v729 = vpop.f32.mrb[0].mxu0
      %v730 = vadd.f32 %v646, %v729
      %v731 = vpop.f32.mrb[0].mxu0
      %732 = vmatprep.mubr.f32.mxu0 0.0
      %733 = vmatmul.mubr.f32.gmra.mrb[0].mxu0 %v597
      %v734 = vpop.f32.mrb[0].mxu0
      %v735 = vadd.f32 %v646, %v734
      %v736 = vpop.f32.mrb[0].mxu0
      %737 = vmatprep.mubr.f32.mxu0 0.0
      %738 = vmatmul.mubr.f32.gmra.mrb[0].mxu0 %v598
      %v739 = vpop.f32.mrb[0].mxu0
      %v740 = vadd.f32 %v646, %v739
      %v741 = vpop.f32.mrb[0].mxu0
      %742 = vmatprep.mubr.f32.mxu0 0.0
      %743 = vmatmul.mubr.f32.gmra.mrb[0].mxu0 %v599
      %v744 = vpop.f32.mrb[0].mxu0
      %v745 = vadd.f32 %v646, %v744
      %v746 = vpop.f32.mrb[0].mxu0
      %747 = vmatprep.mubr.f32.mxu0 0.0
      %748 = vmatmul.mubr.f32.gmra.mrb[0].mxu0 %v600
      %v749 = vpop.f32.mrb[0].mxu0
      %v750 = vadd.f32 %v646, %v749
      %v751 = vpop.f32.mrb[0].mxu0
      %752 = vmatprep.mubr.f32.mxu0 0.0
      %753 = vmatmul.mubr.f32.gmra.mrb[0].mxu0 %v601
      %v754 = vpop.f32.mrb[0].mxu0
      %v755 = vadd.f32 %v646, %v754
      %v756 = vpop.f32.mrb[0].mxu0
      %757 = vmatprep.mubr.f32.mxu0 0.0
      %758 = vmatmul.mubr.f32.gmra.mrb[0].mxu0 %v602
      %v759 = vpop.f32.mrb[0].mxu0
      %v760 = vadd.f32 %v646, %v759
      %v761 = vpop.f32.mrb[0].mxu0
      %762 = vmatprep.mubr.f32.mxu0 0.0
      %763 = vmatmul.mubr.f32.gmra.mrb[0].mxu0 %v603
      %v764 = vpop.f32.mrb[0].mxu0
      %v765 = vadd.f32 %v646, %v764
      %v766 = vpop.f32.mrb[0].mxu0
      %767 = vmatprep.mubr.f32.mxu0 0.0
      %768 = vmatmul.mubr.f32.gmra.mrb[0].mxu0 %v604
      %v769 = vpop.f32.mrb[0].mxu0
      %v770 = vadd.f32 %v646, %v769
      %v771 = vpop.f32.mrb[0].mxu0
      %772 = vmatprep.mubr.f32.mxu0 0.0
      %773 = vmatmul.mubr.f32.gmra.mrb[0].mxu0 %v605
      %v774 = vpop.f32.mrb[0].mxu0
      %v775 = vadd.f32 %v646, %v774
      %v776 = vpop.f32.mrb[0].mxu0
      %777 = vmatprep.mubr.f32.mxu0 0.0
      %778 = vmatmul.mubr.f32.gmra.mrb[0].mxu0 %v606
      %v779 = vpop.f32.mrb[0].mxu0
      %v780 = vadd.f32 %v646, %v779
      %v781 = vpop.f32.mrb[0].mxu0
      %782 = vmatprep.mubr.f32.mxu0 0.0
      %783 = vmatmul.mubr.f32.gmra.mrb[0].mxu0 %v607
      %v784 = vpop.f32.mrb[0].mxu0
      %v785 = vadd.f32 %v646, %v784
      %v786 = vpop.f32.mrb[0].mxu0
      %787 = vmatprep.mubr.f32.mxu0 0.0
      %788 = vmatmul.mubr.f32.gmra.mrb[0].mxu0 %v608
      %v789 = vpop.f32.mrb[0].mxu0
      %v790 = vadd.f32 %v646, %v789
      %v791 = vpop.f32.mrb[0].mxu0
      %792 = vmatprep.mubr.f32.mxu0 0.0
      %793 = vmatmul.mubr.f32.gmra.mrb[0].mxu0 %v609
      %v794 = vpop.f32.mrb[0].mxu0
      %v795 = vadd.f32 %v646, %v794
      %v796 = vpop.f32.mrb[0].mxu0
      %797 = vmatprep.mubr.f32.mxu0 0.0
      %798 = vmatmul.mubr.f32.gmra.mrb[0].mxu0 %v610
      %v799 = vpop.f32.mrb[0].mxu0
      %v800 = vadd.f32 %v646, %v799
      %v801 = vpop.f32.mrb[0].mxu0
      %802 = vmatprep.mubr.f32.mxu0 0.0
      %803 = vmatmul.mubr.f32.gmra.mrb[0].mxu0 %v611
      %v804 = vpop.f32.mrb[0].mxu0
      %v805 = vadd.f32 %v646, %v804
      %v806 = vpop.f32.mrb[0].mxu0
      %807 = vmatprep.mubr.f32.mxu0 0.0
      %808 = vmatmul.mubr.f32.gmra.mrb[0].mxu0 %v612
      %v809 = vpop.f32.mrb[0].mxu0
      %v810 = vadd.f32 %v646, %v809
      %v811 = vpop.f32.mrb[0].mxu0
      %812 = vmatprep.mubr.f32.mxu0 0.0
      %813 = vmatmul.mubr.f32.gmra.mrb[0].mxu0 %v613
      %v814 = vpop.f32.mrb[0].mxu0
      %v815 = vadd.f32 %v646, %v814
      %v816 = vpop.f32.mrb[0].mxu0
      %817 = vmatprep.mubr.f32.mxu0 0.0
      %818 = vmatmul.mubr.f32.gmra.mrb[0].mxu0 %v614
      %v819 = vpop.f32.mrb[0].mxu0
      %v820 = vadd.f32 %v646, %v819
      %v821 = vpop.f32.mrb[0].mxu0
      %822 = vmatprep.mubr.f32.mxu0 0.0
      %823 = vmatmul.mubr.f32.gmra.mrb[0].mxu0 %v615
      %v824 = vpop.f32.mrb[0].mxu0
      %v825 = vadd.f32 %v646, %v824
      %v826 = vpop.f32.mrb[0].mxu0
      %827 = vmatprep.mubr.f32.mxu0 0.0
      %828 = vmatmul.mubr.f32.gmra.mrb[0].mxu0 %v616
      %v829 = vpop.f32.mrb[0].mxu0
      %v830 = vadd.f32 %v646, %v829
      %v831 = vpop.f32.mrb[0].mxu0
      %832 = vmatprep.mubr.f32.mxu0 0.0
      %833 = vmatmul.mubr.f32.gmra.mrb[0].mxu0 %v617
      %v834 = vpop.f32.mrb[0].mxu0
      %v835 = vadd.f32 %v646, %v834
      %v836 = vpop.f32.mrb[0].mxu0
      %837 = vmatprep.mubr.f32.mxu0 0.0
      %838 = vmatmul.mubr.f32.gmra.mrb[0].mxu0 %v618
      %v839 = vpop.f32.mrb[0].mxu0
      %v840 = vadd.f32 %v646, %v839
      %v841 = vpop.f32.mrb[0].mxu0
      %842 = vmatprep.mubr.f32.mxu0 0.0
      %843 = vmatmul.mubr.f32.gmra.mrb[0].mxu0 %v619
      %v844 = vpop.f32.mrb[0].mxu0
      %v845 = vadd.f32 %v646, %v844
      %v846 = vpop.f32.mrb[0].mxu0
      %847 = vmatprep.mubr.f32.mxu0 0.0
      %848 = vmatmul.mubr.f32.gmra.mrb[0].mxu0 %v620
      %v849 = vpop.f32.mrb[0].mxu0
      %v850 = vadd.f32 %v646, %v849
      %v851 = vpop.f32.mrb[0].mxu0
      %852 = vmatprep.mubr.f32.mxu0 0.0
      %853 = vmatmul.mubr.f32.gmra.mrb[0].mxu0 %v621
      %v854 = vpop.f32.mrb[0].mxu0
      %v855 = vadd.f32 %v646, %v854
      %v856 = vpop.f32.mrb[0].mxu0
      %857 = vmatprep.mubr.f32.mxu0 0.0
      %858 = vmatmul.mubr.f32.gmra.mrb[0].mxu0 %v622
      %v859 = vpop.f32.mrb[0].mxu0
      %v860 = vadd.f32 %v646, %v859
      %v861 = vpop.f32.mrb[0].mxu0
      %862 = vmatprep.mubr.f32.mxu0 0.0
      %863 = vmatmul.mubr.f32.gmra.mrb[0].mxu0 %v623
      %v864 = vpop.f32.mrb[0].mxu0
      %v865 = vadd.f32 %v646, %v864
      %v866 = vpop.f32.mrb[0].mxu0
      %867 = vmatprep.mubr.f32.mxu0 0.0
      %868 = vmatmul.mubr.f32.gmra.mrb[0].mxu0 %v624
      %v869 = vpop.f32.mrb[0].mxu0
      %v870 = vadd.f32 %v646, %v869
      %v871 = vpop.f32.mrb[0].mxu0
      %872 = vdwg.mxu0
      %873 = vmax.xlane.f32.xlu0 %v715
      %v874 = vpop.xlane.xlu0 %873
      %875 = vmax.xlane.f32.xlu0 %v720
      %v876 = vpop.xlane.xlu0 %875
      %877 = vmax.xlane.f32.xlu0 %v725
      %v878 = vpop.xlane.xlu0 %877
      %879 = vmax.xlane.f32.xlu0 %v730
      %v880 = vpop.xlane.xlu0 %879
      %881 = vmax.xlane.f32.xlu0 %v735
      %v882 = vpop.xlane.xlu0 %881
      %883 = vmax.xlane.f32.xlu0 %v740
      %v884 = vpop.xlane.xlu0 %883
      %885 = vmax.xlane.f32.xlu0 %v745
      %v886 = vpop.xlane.xlu0 %885
      %887 = vmax.xlane.f32.xlu0 %v750
      %v888 = vpop.xlane.xlu0 %887
      %889 = vmax.xlane.f32.xlu0 %v755
      %v890 = vpop.xlane.xlu0 %889
      %891 = vmax.xlane.f32.xlu0 %v760
      %v892 = vpop.xlane.xlu0 %891
      %893 = vmax.xlane.f32.xlu0 %v765
      %v894 = vpop.xlane.xlu0 %893
      %895 = vmax.xlane.f32.xlu0 %v770
      %v896 = vpop.xlane.xlu0 %895
      %897 = vmax.xlane.f32.xlu0 %v775
      %v898 = vpop.xlane.xlu0 %897
      %899 = vmax.xlane.f32.xlu0 %v780
      %v900 = vpop.xlane.xlu0 %899
      %901 = vmax.xlane.f32.xlu0 %v785
      %v902 = vpop.xlane.xlu0 %901
      %903 = vmax.xlane.f32.xlu0 %v790
      %v904 = vpop.xlane.xlu0 %903
      %905 = vmax.xlane.f32.xlu0 %v795
      %v906 = vpop.xlane.xlu0 %905
      %907 = vmax.xlane.f32.xlu0 %v800
      %v908 = vpop.xlane.xlu0 %907
      %909 = vmax.xlane.f32.xlu0 %v805
      %v910 = vpop.xlane.xlu0 %909
      %911 = vmax.xlane.f32.xlu0 %v810
      %v912 = vpop.xlane.xlu0 %911
      %913 = vmax.xlane.f32.xlu0 %v815
      %v914 = vpop.xlane.xlu0 %913
      %915 = vmax.xlane.f32.xlu0 %v820
      %v916 = vpop.xlane.xlu0 %915
      %917 = vmax.xlane.f32.xlu0 %v825
      %v918 = vpop.xlane.xlu0 %917
      %919 = vmax.xlane.f32.xlu0 %v830
      %v920 = vpop.xlane.xlu0 %919
      %921 = vmax.xlane.f32.xlu0 %v835
      %v922 = vpop.xlane.xlu0 %921
      %923 = vmax.xlane.f32.xlu0 %v840
      %v924 = vpop.xlane.xlu0 %923
      %925 = vmax.xlane.f32.xlu0 %v845
      %v926 = vpop.xlane.xlu0 %925
      %927 = vmax.xlane.f32.xlu0 %v850
      %v928 = vpop.xlane.xlu0 %927
      %929 = vmax.xlane.f32.xlu0 %v855
      %v930 = vpop.xlane.xlu0 %929
      %931 = vmax.xlane.f32.xlu0 %v860
      %v932 = vpop.xlane.xlu0 %931
      %933 = vmax.xlane.f32.xlu0 %v865
      %v934 = vpop.xlane.xlu0 %933
      %935 = vmax.xlane.f32.xlu0 %v870
      %v936 = vpop.xlane.xlu0 %935
      %v937 = vsub.f32 %v715, %v874
      %v938 = vsub.f32 %v720, %v876
      %v939 = vsub.f32 %v725, %v878
      %v940 = vsub.f32 %v730, %v880
      %v941 = vsub.f32 %v735, %v882
      %v942 = vsub.f32 %v740, %v884
      %v943 = vsub.f32 %v745, %v886
      %v944 = vsub.f32 %v750, %v888
      %v945 = vsub.f32 %v755, %v890
      %v946 = vsub.f32 %v760, %v892
      %v947 = vsub.f32 %v765, %v894
      %v948 = vsub.f32 %v770, %v896
      %v949 = vsub.f32 %v775, %v898
      %v950 = vsub.f32 %v780, %v900
      %v951 = vsub.f32 %v785, %v902
      %v952 = vsub.f32 %v790, %v904
      %v953 = vsub.f32 %v795, %v906
      %v954 = vsub.f32 %v800, %v908
      %v955 = vsub.f32 %v805, %v910
      %v956 = vsub.f32 %v810, %v912
      %v957 = vsub.f32 %v815, %v914
      %v958 = vsub.f32 %v820, %v916
      %v959 = vsub.f32 %v825, %v918
      %v960 = vsub.f32 %v830, %v920
      %v961 = vsub.f32 %v835, %v922
      %v962 = vsub.f32 %v840, %v924
      %v963 = vsub.f32 %v845, %v926
      %v964 = vsub.f32 %v850, %v928
      %v965 = vsub.f32 %v855, %v930
      %v966 = vsub.f32 %v860, %v932
      %v967 = vsub.f32 %v865, %v934
      %v968 = vsub.f32 %v870, %v936
      %v969 = vmul.f32 %v937, 1.442695
      %v970 = vpow.pop %v969
      %v971 = vmul.f32 %v938, 1.442695
      %v972 = vpow.pop %v971
      %v973 = vmul.f32 %v939, 1.442695
      %v974 = vpow.pop %v973
      %v975 = vmul.f32 %v940, 1.442695
      %v976 = vpow.pop %v975
      %v977 = vmul.f32 %v941, 1.442695
      %v978 = vpow.pop %v977
      %v979 = vmul.f32 %v942, 1.442695
      %v980 = vpow.pop %v979
      %v981 = vmul.f32 %v943, 1.442695
      %v982 = vpow.pop %v981
      %v983 = vmul.f32 %v944, 1.442695
      %v984 = vpow.pop %v983
      %v985 = vmul.f32 %v945, 1.442695
      %v986 = vpow.pop %v985
      %v987 = vmul.f32 %v946, 1.442695
      %v988 = vpow.pop %v987
      %v989 = vmul.f32 %v947, 1.442695
      %v990 = vpow.pop %v989
      %v991 = vmul.f32 %v948, 1.442695
      %v992 = vpow.pop %v991
      %v993 = vmul.f32 %v949, 1.442695
      %v994 = vpow.pop %v993
      %v995 = vmul.f32 %v950, 1.442695
      %v996 = vpow.pop %v995
      %v997 = vmul.f32 %v951, 1.442695
      %v998 = vpow.pop %v997
      %v999 = vmul.f32 %v952, 1.442695
      %v1000 = vpow.pop %v999
      %v1001 = vmul.f32 %v953, 1.442695
      %v1002 = vpow.pop %v1001
      %v1003 = vmul.f32 %v954, 1.442695
      %v1004 = vpow.pop %v1003
      %v1005 = vmul.f32 %v955, 1.442695
      %v1006 = vpow.pop %v1005
      %v1007 = vmul.f32 %v956, 1.442695
      %v1008 = vpow.pop %v1007
      %v1009 = vmul.f32 %v957, 1.442695
      %v1010 = vpow.pop %v1009
      %v1011 = vmul.f32 %v958, 1.442695
      %v1012 = vpow.pop %v1011
      %v1013 = vmul.f32 %v959, 1.442695
      %v1014 = vpow.pop %v1013
      %v1015 = vmul.f32 %v960, 1.442695
      %v1016 = vpow.pop %v1015
      %v1017 = vmul.f32 %v961, 1.442695
      %v1018 = vpow.pop %v1017
      %v1019 = vmul.f32 %v962, 1.442695
      %v1020 = vpow.pop %v1019
      %v1021 = vmul.f32 %v963, 1.442695
      %v1022 = vpow.pop %v1021
      %v1023 = vmul.f32 %v964, 1.442695
      %v1024 = vpow.pop %v1023
      %v1025 = vmul.f32 %v965, 1.442695
      %v1026 = vpow.pop %v1025
      %v1027 = vmul.f32 %v966, 1.442695
      %v1028 = vpow.pop %v1027
      %v1029 = vmul.f32 %v967, 1.442695
      %v1030 = vpow.pop %v1029
      %v1031 = vmul.f32 %v968, 1.442695
      %v1032 = vpow.pop %v1031
      %1033 = vadd.xlane.f32.xlu0 %v970
      %v1034 = vpop.xlane.xlu0 %1033
      %1035 = vadd.xlane.f32.xlu0 %v972
      %v1036 = vpop.xlane.xlu0 %1035
      %1037 = vadd.xlane.f32.xlu0 %v974
      %v1038 = vpop.xlane.xlu0 %1037
      %1039 = vadd.xlane.f32.xlu0 %v976
      %v1040 = vpop.xlane.xlu0 %1039
      %1041 = vadd.xlane.f32.xlu0 %v978
      %v1042 = vpop.xlane.xlu0 %1041
      %1043 = vadd.xlane.f32.xlu0 %v980
      %v1044 = vpop.xlane.xlu0 %1043
      %1045 = vadd.xlane.f32.xlu0 %v982
      %v1046 = vpop.xlane.xlu0 %1045
      %1047 = vadd.xlane.f32.xlu0 %v984
      %v1048 = vpop.xlane.xlu0 %1047
      %1049 = vadd.xlane.f32.xlu0 %v986
      %v1050 = vpop.xlane.xlu0 %1049
      %1051 = vadd.xlane.f32.xlu0 %v988
      %v1052 = vpop.xlane.xlu0 %1051
      %1053 = vadd.xlane.f32.xlu0 %v990
      %v1054 = vpop.xlane.xlu0 %1053
      %1055 = vadd.xlane.f32.xlu0 %v992
      %v1056 = vpop.xlane.xlu0 %1055
      %1057 = vadd.xlane.f32.xlu0 %v994
      %v1058 = vpop.xlane.xlu0 %1057
      %1059 = vadd.xlane.f32.xlu0 %v996
      %v1060 = vpop.xlane.xlu0 %1059
      %1061 = vadd.xlane.f32.xlu0 %v998
      %v1062 = vpop.xlane.xlu0 %1061
      %1063 = vadd.xlane.f32.xlu0 %v1000
      %v1064 = vpop.xlane.xlu0 %1063
      %1065 = vadd.xlane.f32.xlu0 %v1002
      %v1066 = vpop.xlane.xlu0 %1065
      %1067 = vadd.xlane.f32.xlu0 %v1004
      %v1068 = vpop.xlane.xlu0 %1067
      %1069 = vadd.xlane.f32.xlu0 %v1006
      %v1070 = vpop.xlane.xlu0 %1069
      %1071 = vadd.xlane.f32.xlu0 %v1008
      %v1072 = vpop.xlane.xlu0 %1071
      %1073 = vadd.xlane.f32.xlu0 %v1010
      %v1074 = vpop.xlane.xlu0 %1073
      %1075 = vadd.xlane.f32.xlu0 %v1012
      %v1076 = vpop.xlane.xlu0 %1075
      %1077 = vadd.xlane.f32.xlu0 %v1014
      %v1078 = vpop.xlane.xlu0 %1077
      %1079 = vadd.xlane.f32.xlu0 %v1016
      %v1080 = vpop.xlane.xlu0 %1079
      %1081 = vadd.xlane.f32.xlu0 %v1018
      %v1082 = vpop.xlane.xlu0 %1081
      %1083 = vadd.xlane.f32.xlu0 %v1020
      %v1084 = vpop.xlane.xlu0 %1083
      %1085 = vadd.xlane.f32.xlu0 %v1022
      %v1086 = vpop.xlane.xlu0 %1085
      %1087 = vadd.xlane.f32.xlu0 %v1024
      %v1088 = vpop.xlane.xlu0 %1087
      %1089 = vadd.xlane.f32.xlu0 %v1026
      %v1090 = vpop.xlane.xlu0 %1089
      %1091 = vadd.xlane.f32.xlu0 %v1028
      %v1092 = vpop.xlane.xlu0 %1091
      %1093 = vadd.xlane.f32.xlu0 %v1030
      %v1094 = vpop.xlane.xlu0 %1093
      %1095 = vadd.xlane.f32.xlu0 %v1032
      %v1096 = vpop.xlane.xlu0 %1095
      %v1097 = vrcp.pop %v1034
      %v1098 = vmul.f32 %v970, %v1097
      %v1099 = vrcp.pop %v1036
      %v1100 = vmul.f32 %v972, %v1099
      %v1101 = vrcp.pop %v1038
      %v1102 = vmul.f32 %v974, %v1101
      %v1103 = vrcp.pop %v1040
      %v1104 = vmul.f32 %v976, %v1103
      %v1105 = vrcp.pop %v1042
      %v1106 = vmul.f32 %v978, %v1105
      %v1107 = vrcp.pop %v1044
      %v1108 = vmul.f32 %v980, %v1107
      %v1109 = vrcp.pop %v1046
      %v1110 = vmul.f32 %v982, %v1109
      %v1111 = vrcp.pop %v1048
      %v1112 = vmul.f32 %v984, %v1111
      %v1113 = vrcp.pop %v1050
      %v1114 = vmul.f32 %v986, %v1113
      %v1115 = vrcp.pop %v1052
      %v1116 = vmul.f32 %v988, %v1115
      %v1117 = vrcp.pop %v1054
      %v1118 = vmul.f32 %v990, %v1117
      %v1119 = vrcp.pop %v1056
      %v1120 = vmul.f32 %v992, %v1119
      %v1121 = vrcp.pop %v1058
      %v1122 = vmul.f32 %v994, %v1121
      %v1123 = vrcp.pop %v1060
      %v1124 = vmul.f32 %v996, %v1123
      %v1125 = vrcp.pop %v1062
      %v1126 = vmul.f32 %v998, %v1125
      %v1127 = vrcp.pop %v1064
      %v1128 = vmul.f32 %v1000, %v1127
      %v1129 = vrcp.pop %v1066
      %v1130 = vmul.f32 %v1002, %v1129
      %v1131 = vrcp.pop %v1068
      %v1132 = vmul.f32 %v1004, %v1131
      %v1133 = vrcp.pop %v1070
      %v1134 = vmul.f32 %v1006, %v1133
      %v1135 = vrcp.pop %v1072
      %v1136 = vmul.f32 %v1008, %v1135
      %v1137 = vrcp.pop %v1074
      %v1138 = vmul.f32 %v1010, %v1137
      %v1139 = vrcp.pop %v1076
      %v1140 = vmul.f32 %v1012, %v1139
      %v1141 = vrcp.pop %v1078
      %v1142 = vmul.f32 %v1014, %v1141
      %v1143 = vrcp.pop %v1080
      %v1144 = vmul.f32 %v1016, %v1143
      %v1145 = vrcp.pop %v1082
      %v1146 = vmul.f32 %v1018, %v1145
      %v1147 = vrcp.pop %v1084
      %v1148 = vmul.f32 %v1020, %v1147
      %v1149 = vrcp.pop %v1086
      %v1150 = vmul.f32 %v1022, %v1149
      %v1151 = vrcp.pop %v1088
      %v1152 = vmul.f32 %v1024, %v1151
      %v1153 = vrcp.pop %v1090
      %v1154 = vmul.f32 %v1026, %v1153
      %v1155 = vrcp.pop %v1092
      %v1156 = vmul.f32 %v1028, %v1155
      %v1157 = vrcp.pop %v1094
      %v1158 = vmul.f32 %v1030, %v1157
      %v1159 = vrcp.pop %v1096
      %v1160 = vmul.f32 %v1032, %v1159
      %vm1161 = vcmask 31744
      %1162 = vst.msk [vmem:[%s226] sm:$0xff] %vm1161, %v1098
      %1163 = vst.msk [vmem:[%s226 + $0x8] sm:$0xff] %vm1161, %v1100
      %1164 = vst.msk [vmem:[%s226 + $0x10] sm:$0xff] %vm1161, %v1102
      %1165 = vst.msk [vmem:[%s226 + $0x18] sm:$0xff] %vm1161, %v1104
      %1166 = vst.msk [vmem:[%s226 + $0x20] sm:$0xff] %vm1161, %v1106
      %1167 = vst.msk [vmem:[%s226 + $0x28] sm:$0xff] %vm1161, %v1108
      %1168 = vst.msk [vmem:[%s226 + $0x30] sm:$0xff] %vm1161, %v1110
      %1169 = vst.msk [vmem:[%s226 + $0x38] sm:$0xff] %vm1161, %v1112
      %1170 = vst.msk [vmem:[%s226 + $0x40] sm:$0xff] %vm1161, %v1114
      %1171 = vst.msk [vmem:[%s226 + $0x48] sm:$0xff] %vm1161, %v1116
      %1172 = vst.msk [vmem:[%s226 + $0x50] sm:$0xff] %vm1161, %v1118
      %1173 = vst.msk [vmem:[%s226 + $0x58] sm:$0xff] %vm1161, %v1120
      %1174 = vst.msk [vmem:[%s226 + $0x60] sm:$0xff] %vm1161, %v1122
      %1175 = vst.msk [vmem:[%s226 + $0x68] sm:$0xff] %vm1161, %v1124
      %1176 = vst.msk [vmem:[%s226 + $0x70] sm:$0xff] %vm1161, %v1126
      %1177 = vst.msk [vmem:[%s226 + $0x78] sm:$0xff] %vm1161, %v1128
      %1178 = vst.msk [vmem:[%s226 + $0x80] sm:$0xff] %vm1161, %v1130
      %1179 = vst.msk [vmem:[%s226 + $0x88] sm:$0xff] %vm1161, %v1132
      %1180 = vst.msk [vmem:[%s226 + $0x90] sm:$0xff] %vm1161, %v1134
      %1181 = vst.msk [vmem:[%s226 + $0x98] sm:$0xff] %vm1161, %v1136
      %1182 = vst.msk [vmem:[%s226 + $0xa0] sm:$0xff] %vm1161, %v1138
      %1183 = vst.msk [vmem:[%s226 + $0xa8] sm:$0xff] %vm1161, %v1140
      %1184 = vst.msk [vmem:[%s226 + $0xb0] sm:$0xff] %vm1161, %v1142
      %1185 = vst.msk [vmem:[%s226 + $0xb8] sm:$0xff] %vm1161, %v1144
      %1186 = vst.msk [vmem:[%s226 + $0xc0] sm:$0xff] %vm1161, %v1146
      %1187 = vst.msk [vmem:[%s226 + $0xc8] sm:$0xff] %vm1161, %v1148
      %1188 = vst.msk [vmem:[%s226 + $0xd0] sm:$0xff] %vm1161, %v1150
      %1189 = vst.msk [vmem:[%s226 + $0xd8] sm:$0xff] %vm1161, %v1152
      %1190 = vst.msk [vmem:[%s226 + $0xe0] sm:$0xff] %vm1161, %v1154
      %1191 = vst.msk [vmem:[%s226 + $0xe8] sm:$0xff] %vm1161, %v1156
      %1192 = vst.msk [vmem:[%s226 + $0xf0] sm:$0xff] %vm1161, %v1158
      %1193 = vst.msk [vmem:[%s226 + $0xf8] sm:$0xff] %vm1161, %v1160
      %s1194 = smul.u32 32, %s16
      %p1195 = scmp.lt.s32.totalorder %s1194, 63
      %s1196 = scalar_select %p1195, %s1194, 63
      %s1197 = smul.addr %s1196, 8
      %s1198 = scalar_lea.vmem %s5, %s1197
      // Predicated region
      $region41: #{_actor_forward_padded.1} parent=39 // pred_check
        %p1199 = pneg %p144
      $region42: #{_actor_forward_padded.1} parent=39 // pred_check_branch
        %1201 = sbr.rel (%p1199) target = $region44
      $region43: #{_actor_forward_padded.1} parent=39 // pred_region
        %s1202 = smul.u32 32, %s16
      $region44: #{_actor_forward_padded.1} parent=39 // pred_fallthru
        _
    $region40: #{_actor_forward_padded.1} parent=5 // pred_fallthru
      _
    %p1203 = scmp.le.s32.totalorder 2, %s11
    // Predicated region
    $region45: #{_actor_forward_padded.1} parent=5 // pred_check
      %p1204 = pneg %p1203
    $region46: #{_actor_forward_padded.1} parent=5 // pred_check_branch
      %1206 = sbr.rel (%p1204) target = $region48
    $region47: #{_actor_forward_padded.1} parent=5 // pred_region
      %s1207 = ssub.s32 %s11, 2
      // Predicated region
      $region49: #{_actor_forward_padded.1} parent=47 // pred_check
        %p1208 = pneg %p150
      $region50: #{_actor_forward_padded.1} parent=47 // pred_check_branch
        %1210 = sbr.rel (%p1208) target = $region52
      $region51: #{_actor_forward_padded.1} parent=47 // pred_region
        %s1211 = smul.u32 32, %s17
        %p1212 = scmp.lt.s32.totalorder %s1211, 63
        %s1213 = scalar_select %p1212, %s1211, 63
        %s1214 = smul.addr %s1213, 8
        %s1215 = scalar_lea.vmem %s5, %s1214
      $region52: #{_actor_forward_padded.1} parent=47 // pred_fallthru
        _
    $region48: #{_actor_forward_padded.1} parent=5 // pred_fallthru
      _
  $region6: #{_actor_forward_padded.1} parent=0 // loop_footer
    %s15 = sadd.s32 1, %s11
  $region7: #{_actor_forward_padded.1} parent=0 // loop_footer_branch
    %10 = sbr.rel target = $region3
  $region8: #{_actor_forward_padded.1} parent=0 // loop_exit
    _

</llo_original>
